<compile_context>
chip_gen: v7x
topology: tpu7x:2x2x1
jax: 0.10.0
libtpu: 0.0.40
codegen_flags: <defaults>
</compile_context>

<pallas_src>
import math

import jax
import jax.numpy as jnp
from jax import lax
from jax.experimental import pallas as pl
from jax.experimental.pallas import tpu as pltpu


def _round_up(v, m):
    return ((v + m - 1) // m) * m


def _cdiv(a, b):
    return -(-a // b)


def _gelu(x, approximate):
    if approximate:
        # tanh approximation -> routes transcendental work to the EUP slot.
        # ~1e-3 deviation from torch.nn.GELU() default.
        return jax.nn.gelu(x, approximate=True)
    # Exact erf GELU == torch.nn.GELU() default.
    return 0.5 * x * (1.0 + lax.erf(x * 0.7071067811865476))


def _vmem_capacity_bytes():
    try:
        return int(pltpu.get_tpu_info().vmem_capacity_bytes)
    except Exception:
        return 64 << 20  # conservative fallback (v7x per-TensorCore VMEM)


def _vmem_estimate(t_m, t_h, t_n, d_in_p, in_bytes, w_bytes, out_bytes, needs_scratch):
    """Double-buffered per-step working set in bytes (biases counted sublane-padded)."""
    db = 2
    x_b = db * t_m * d_in_p * in_bytes
    w1_b = db * d_in_p * t_h * w_bytes
    w2_b = db * t_h * t_n * w_bytes
    b_b = db * 8 * (t_h + t_n) * 4
    o_b = db * t_m * t_n * out_bytes
    acc_b = t_m * t_n * 4 if needs_scratch else 0
    return x_b + w1_b + w2_b + b_b + o_b + acc_b


def _make_mlp_kernel(tile_h, approximate_gelu, acc_in_out):
    """Build the fused-MLP kernel body.

    Per grid step (i, j, k):
      x_ref  : (TILE_M, D_in_p)   resident across j, k
      w1_ref : (D_in_p, TILE_H)   H-chunk k of fc1 weights
      b1_ref : (1, TILE_H)        H-chunk k of fc1 bias
      w2_ref : (TILE_H, TILE_N)   (k, j) chunk of fc2 weights
      b2_ref : (1, TILE_N)        D_out-chunk j of fc2 bias
      o_ref  : (TILE_M, TILE_N)   output tile (resident across k)
      scratch: (TILE_M, TILE_N) f32 accumulator, only when o_ref is not f32
    """
    n_sub = 2 if (tile_h % 256 == 0) else 1
    sub_h = tile_h // n_sub

    def kernel(x_ref, w1_ref, b1_ref, w2_ref, b2_ref, o_ref, *scratch):
        k = pl.program_id(2)
        acc_ref = o_ref if acc_in_out else scratch[0]

        x = x_ref[...]
        partial = None
        # Split the H-chunk so fc1 of sub-chunk s+1 (MXU) can overlap the GELU
        # polynomial of sub-chunk s (VALU/EUP) instead of serializing fc1->GELU->fc2.
        for s in range(n_sub):
            lo, hi = s * sub_h, (s + 1) * sub_h
            h = jnp.dot(x, w1_ref[:, lo:hi], preferred_element_type=jnp.float32)
            h = h + b1_ref[:, lo:hi].astype(jnp.float32)
            h = _gelu(h, approximate_gelu)
            # Dropout(p=0) is the identity -> no-op.
            p = jnp.dot(h.astype(w2_ref.dtype), w2_ref[lo:hi, :],
                        preferred_element_type=jnp.float32)
            partial = p if partial is None else partial + p

        @pl.when(k == 0)
        def _():
            # First H-chunk: store directly (no zero-fill + add round trip).
            acc_ref[...] = partial.astype(acc_ref.dtype)

        @pl.when(k != 0)
        def _():
            acc_ref[...] += partial.astype(acc_ref.dtype)

        @pl.when(k == pl.num_programs(2) - 1)
        def _():
            # Fold the fc2 bias once per output tile, then (down)cast and write.
            o_ref[...] = (acc_ref[...].astype(jnp.float32)
                          + b2_ref[...].astype(jnp.float32)).astype(o_ref.dtype)

    return kernel


def mlp_pallas(x, w1, b1, w2, b2, *, compute_dtype=None, approximate_gelu=False,
               tile_m=None, tile_h=None, tile_n=None):
    """Fused MLP forward.

    x : (..., D_in); w1: (D_in, H); b1: (H,); w2: (H, D_out); b2: (D_out,).
    compute_dtype : optional matmul dtype (e.g. jnp.bfloat16) for a fast MXU path;
                    bias add / GELU / accumulation stay in f32. Output keeps x.dtype.
    approximate_gelu : use tanh-approx GELU (EUP) instead of the exact erf GELU.
    """
    orig_shape = x.shape
    D_in = orig_shape[-1]
    H = w1.shape[1]
    D_out = w2.shape[1]
    M = int(math.prod(orig_shape[:-1])) if len(orig_shape) > 1 else 1

    out_dtype = x.dtype
    if compute_dtype is not None:
        x = x.astype(compute_dtype)
        w1 = w1.astype(compute_dtype)
        w2 = w2.astype(compute_dtype)

    in_bytes = jnp.dtype(x.dtype).itemsize
    w_bytes = jnp.dtype(w1.dtype).itemsize
    out_bytes = jnp.dtype(out_dtype).itemsize
    needs_scratch = jnp.dtype(out_dtype) != jnp.float32   # f32 output -> accumulate in o_ref

    # ---------------- generation-aware tile selection --------------------------------
    vmem_cap = _vmem_capacity_bytes()
    big_vmem = vmem_cap >= (100 << 20)        # v5e / v6e (128 MiB) vs v7x (64 MiB)
    budget = int(0.70 * vmem_cap)             # headroom for Mosaic internal scratch

    D_in_p = _round_up(D_in, 128)
    H_128 = _round_up(H, 128)
    D_out_128 = _round_up(D_out, 128)

    tgt_m = tile_m if tile_m is not None else (512 if big_vmem else 256)
    tgt_h = tile_h if tile_h is not None else (2048 if big_vmem else 1024)
    tgt_n = tile_n if tile_n is not None else (2048 if big_vmem else 1024)

    def balanced(dim_p, target, align):
        n_t = max(1, _cdiv(dim_p, target))
        return min(dim_p, _round_up(_cdiv(dim_p, n_t), align))

    t_h = balanced(H_128, tgt_h, 128)
    t_n = balanced(D_out_128, tgt_n, 128)

    def m_tiling(target):
        n_t = max(1, _cdiv(M, target))
        # Force >=2 M-tiles so the "parallel" M axis actually spans both v7x
        # TensorCores for small-M (decode) shapes; harmless on single-TC chips.
        if n_t == 1 and M > 8:
            n_t = 2
        return _round_up(_cdiv(M, n_t), 8), n_t

    t_m, m_tiles = m_tiling(tgt_m)

    # Shrink until the double-buffered working set fits the VMEM budget
    # (h first, then the output-feature tile, then the token tile).
    while _vmem_estimate(t_m, t_h, t_n, D_in_p, in_bytes, w_bytes, out_bytes,
                         needs_scratch) > budget:
        if t_h > 128:
            t_h = max(128, _round_up(t_h // 2, 128))
        elif t_n > 128:
            t_n = max(128, _round_up(t_n // 2, 128))
        elif t_m > 8:
            t_m = max(8, _round_up(t_m // 2, 8))
        else:
            break

    t_m, m_tiles = m_tiling(t_m)              # re-balance M after any shrink
    M_p = t_m * m_tiles
    H_p = _round_up(H, t_h)
    D_out_p = _round_up(D_out, t_n)
    h_tiles = H_p // t_h
    n_tiles = D_out_p // t_n

    est = _vmem_estimate(t_m, t_h, t_n, D_in_p, in_bytes, w_bytes, out_bytes, needs_scratch)
    vmem_limit = int(min(int(0.9 * vmem_cap), max(32 << 20, int(1.5 * est) + (4 << 20))))

    # ---------------- operand padding (zero rows/cols contribute nothing) ------------
    x2d = x.reshape(M, D_in)
    x_p = x2d if (M_p == M and D_in_p == D_in) else \
        jnp.pad(x2d, ((0, M_p - M), (0, D_in_p - D_in)))
    # TODO(synk): for repeated calls, pre-pad/cast the weights once outside this function
    # so padded copies aren't re-materialized in HBM every call.
    w1_p = w1 if (D_in_p == D_in and H_p == H) else \
        jnp.pad(w1, ((0, D_in_p - D_in), (0, H_p - H)))
    b1_p = (b1 if H_p == H else jnp.pad(b1, ((0, H_p - H),))).reshape(1, H_p)
    w2_p = w2 if (H_p == H and D_out_p == D_out) else \
        jnp.pad(w2, ((0, H_p - H), (0, D_out_p - D_out)))
    b2_p = (b2 if D_out_p == D_out else jnp.pad(b2, ((0, D_out_p - D_out),))).reshape(1, D_out_p)

    # ---------------- pallas_call -----------------------------------------------------
    grid = (m_tiles, n_tiles, h_tiles)
    kernel = _make_mlp_kernel(t_h, approximate_gelu, acc_in_out=not needs_scratch)
    scratch_shapes = [pltpu.VMEM((t_m, t_n), jnp.float32)] if needs_scratch else []

    out_p = pl.pallas_call(
        kernel,
        out_shape=jax.ShapeDtypeStruct((M_p, D_out_p), out_dtype),
        grid_spec=pltpu.PrefetchScalarGridSpec(
            num_scalar_prefetch=0,
            grid=grid,
            in_specs=[
                # x tile: depends on i only (resident across j and the H reduction).
                pl.BlockSpec((t_m, D_in_p), lambda i, j, k: (i, 0)),
                # fc1 weight / bias: H-chunk k.
                pl.BlockSpec((D_in_p, t_h), lambda i, j, k: (0, k)),
                pl.BlockSpec((1, t_h), lambda i, j, k: (0, k)),
                # fc2 weight: (H-chunk k, D_out-chunk j).
                pl.BlockSpec((t_h, t_n), lambda i, j, k: (k, j)),
                # fc2 bias: D_out-chunk j.
                pl.BlockSpec((1, t_n), lambda i, j, k: (0, j)),
            ],
            # Same output block across k (innermost) -> acts as the accumulator target.
            out_specs=pl.BlockSpec((t_m, t_n), lambda i, j, k: (i, j)),
            scratch_shapes=scratch_shapes,
        ),
        compiler_params=pltpu.CompilerParams(
            dimension_semantics=("parallel", "parallel", "arbitrary"),
            vmem_limit_bytes=vmem_limit,
        ),
    )(x_p, w1_p, b1_p, w2_p, b2_p)

    return out_p[:M, :D_out].reshape(*orig_shape[:-1], D_out)


def init_mlp_params(key, in_features, hidden_features, out_features, dtype=jnp.float32):
    """Deterministic init mimicking nn.Linear (uniform +-1/sqrt(fan_in))."""
    k1, k2, k3, k4 = jax.random.split(key, 4)
    bound1 = 1.0 / (in_features ** 0.5)
    bound2 = 1.0 / (hidden_features ** 0.5)
    # Stored as (in, out) so the kernel computes x @ W (== x @ W_pt.T in PyTorch terms).
    w1 = jax.random.uniform(k1, (in_features, hidden_features), dtype, -bound1, bound1)
    b1 = jax.random.uniform(k2, (hidden_features,), dtype, -bound1, bound1)
    w2 = jax.random.uniform(k3, (hidden_features, out_features), dtype, -bound2, bound2)
    b2 = jax.random.uniform(k4, (out_features,), dtype, -bound2, bound2)
    return w1, b1, w2, b2


if __name__ == "__main__":
    key = jax.random.PRNGKey(0)
    kx, kp = jax.random.split(key)

    B, N = 2, 8           # batch, sequence length
    in_features = 32
    hidden_features = 64
    out_features = 32     # out_features defaults to in_features in the module

    x = jax.random.normal(kx, (B, N, in_features), dtype=jnp.float32)
    w1, b1, w2, b2 = init_mlp_params(kp, in_features, hidden_features, out_features)

    # Pure-JAX reference (exact erf GELU, as in torch.nn.GELU()).
    ref = jnp.dot(x, w1) + b1
    ref = 0.5 * ref * (1.0 + lax.erf(ref * 0.7071067811865476))
    ref = jnp.dot(ref, w2) + b2

    # 1) Default path: exact GELU, native-f32 compute -> tight tolerance.
    out = jax.block_until_ready(mlp_pallas(x, w1, b1, w2, b2))
    assert out.shape == (B, N, out_features)
    assert jnp.allclose(out, ref, atol=1e-5, rtol=1e-5)

    # 2) bf16 fast compute path (matmuls in bf16, f32 bias/GELU/accumulate).
    out_bf16 = jax.block_until_ready(
        mlp_pallas(x, w1, b1, w2, b2, compute_dtype=jnp.bfloat16))
    assert jnp.allclose(out_bf16, ref, atol=5e-2, rtol=5e-2)

    # 3) tanh-approx GELU fast path (EUP-routed).
    out_tanh = jax.block_until_ready(
        mlp_pallas(x, w1, b1, w2, b2, approximate_gelu=True))
    assert jnp.allclose(out_tanh, ref, atol=5e-2, rtol=5e-2)

    print("KERNEL_OK")
</pallas_src>

<mosaic_0001>
module attributes {stable_mosaic.version = 11 : i64} {
  func.func @kernel(%arg0: i32, %arg1: i32, %arg2: i32, %arg3: memref<8x128xf32, #tpu.memory_space<vmem>>, %arg4: memref<128x128xf32, #tpu.memory_space<vmem>>, %arg5: memref<1x128xf32, #tpu.memory_space<vmem>>, %arg6: memref<128x128xf32, #tpu.memory_space<vmem>>, %arg7: memref<1x128xf32, #tpu.memory_space<vmem>>, %arg8: memref<8x128xf32, #tpu.memory_space<vmem>>) attributes {dimension_semantics = [#tpu.dimension_semantics<parallel>, #tpu.dimension_semantics<parallel>, #tpu.dimension_semantics<arbitrary>], iteration_bounds = array<i64: 2, 1, 1>, scalar_prefetch = 0 : i64, scratch_operands = 0 : i64, tpu.core_type = #tpu.core_type<tc>, window_params = [{transform_indices = @transform_0, window_bounds = array<i64: 8, 128>}, {transform_indices = @transform_1, window_bounds = array<i64: 128, 128>}, {transform_indices = @transform_2, window_bounds = array<i64: 1, 128>}, {transform_indices = @transform_3, window_bounds = array<i64: 128, 128>}, {transform_indices = @transform_4, window_bounds = array<i64: 1, 128>}, {transform_indices = @transform_5, window_bounds = array<i64: 8, 128>}]} {
    %c0 = arith.constant 0 : index
    %c0_0 = arith.constant 0 : index
    %0 = vector.load %arg3[%c0, %c0_0] : memref<8x128xf32, #tpu.memory_space<vmem>>, vector<8x128xf32>
    %c0_1 = arith.constant 0 : index
    %c0_2 = arith.constant 0 : index
    %1 = vector.load %arg4[%c0_1, %c0_2] : memref<128x128xf32, #tpu.memory_space<vmem>>, vector<128x128xf32>
    %cst = arith.constant dense<0.000000e+00> : vector<8x128xf32>
    %2 = tpu.matmul %0, %1, %cst {dimension_numbers = #tpu.dot_dimension_numbers<[1], [0], [0], [1], [0, 0, 1, 1], [], []>} : vector<8x128xf32>, vector<128x128xf32>, vector<8x128xf32> -> vector<8x128xf32>
    %c0_3 = arith.constant 0 : index
    %c0_4 = arith.constant 0 : index
    %3 = vector.load %arg5[%c0_3, %c0_4] : memref<1x128xf32, #tpu.memory_space<vmem>>, vector<1x128xf32>
    %4 = vector.broadcast %3 : vector<1x128xf32> to vector<8x128xf32>
    %5 = arith.addf %2, %4 : vector<8x128xf32>
    %cst_5 = arith.constant 5.000000e-01 : f32
    %6 = vector.broadcast %cst_5 : f32 to vector<8x128xf32>
    %7 = arith.mulf %6, %5 : vector<8x128xf32>
    %cst_6 = arith.constant 0.707106769 : f32
    %8 = vector.broadcast %cst_6 : f32 to vector<8x128xf32>
    %9 = arith.mulf %5, %8 : vector<8x128xf32>
    %10 = math.erf %9 : vector<8x128xf32>
    %cst_7 = arith.constant 1.000000e+00 : f32
    %11 = vector.broadcast %cst_7 : f32 to vector<8x128xf32>
    %12 = arith.addf %11, %10 : vector<8x128xf32>
    %13 = arith.mulf %7, %12 : vector<8x128xf32>
    %c0_8 = arith.constant 0 : index
    %c0_9 = arith.constant 0 : index
    %14 = vector.load %arg6[%c0_8, %c0_9] : memref<128x128xf32, #tpu.memory_space<vmem>>, vector<128x128xf32>
    %cst_10 = arith.constant dense<0.000000e+00> : vector<8x128xf32>
    %15 = tpu.matmul %13, %14, %cst_10 {dimension_numbers = #tpu.dot_dimension_numbers<[1], [0], [0], [1], [0, 0, 1, 1], [], []>} : vector<8x128xf32>, vector<128x128xf32>, vector<8x128xf32> -> vector<8x128xf32>
    %c0_i32 = arith.constant 0 : i32
    %16 = arith.cmpi eq, %arg2, %c0_i32 : i32
    %17 = arith.extui %16 : i1 to i32
    %c0_i32_11 = arith.constant 0 : i32
    %18 = arith.cmpi ne, %17, %c0_i32_11 : i32
    scf.if %18 {
      %c0_16 = arith.constant 0 : index
      %c0_17 = arith.constant 0 : index
      %25 = vector.load %arg8[%c0_16, %c0_17] : memref<8x128xf32, #tpu.memory_space<vmem>>, vector<8x128xf32>
      tpu.vector_store %arg8[%c0_16, %c0_17], %15 {strides = array<i32>} : memref<8x128xf32, #tpu.memory_space<vmem>>, vector<8x128xf32>,
    } else {
    }
    %c0_i32_12 = arith.constant 0 : i32
    %19 = arith.cmpi ne, %arg2, %c0_i32_12 : i32
    %20 = arith.extui %19 : i1 to i32
    %c0_i32_13 = arith.constant 0 : i32
    %21 = arith.cmpi ne, %20, %c0_i32_13 : i32
    scf.if %21 {
      %c0_16 = arith.constant 0 : index
      %c0_17 = arith.constant 0 : index
      %25 = vector.load %arg8[%c0_16, %c0_17] : memref<8x128xf32, #tpu.memory_space<vmem>>, vector<8x128xf32>
      %26 = arith.addf %25, %15 : vector<8x128xf32>
      %c0_18 = arith.constant 0 : index
      %c0_19 = arith.constant 0 : index
      %27 = vector.load %arg8[%c0_18, %c0_19] : memref<8x128xf32, #tpu.memory_space<vmem>>, vector<8x128xf32>
      tpu.vector_store %arg8[%c0_18, %c0_19], %26 {strides = array<i32>} : memref<8x128xf32, #tpu.memory_space<vmem>>, vector<8x128xf32>,
    } else {
    }
    %c0_i32_14 = arith.constant 0 : i32
    %22 = arith.cmpi eq, %arg2, %c0_i32_14 : i32
    %23 = arith.extui %22 : i1 to i32
    %c0_i32_15 = arith.constant 0 : i32
    %24 = arith.cmpi ne, %23, %c0_i32_15 : i32
    scf.if %24 {
      %c0_16 = arith.constant 0 : index
      %c0_17 = arith.constant 0 : index
      %25 = vector.load %arg8[%c0_16, %c0_17] : memref<8x128xf32, #tpu.memory_space<vmem>>, vector<8x128xf32>
      %c0_18 = arith.constant 0 : index
      %c0_19 = arith.constant 0 : index
      %26 = vector.load %arg7[%c0_18, %c0_19] : memref<1x128xf32, #tpu.memory_space<vmem>>, vector<1x128xf32>
      %27 = vector.broadcast %26 : vector<1x128xf32> to vector<8x128xf32>
      %28 = arith.addf %25, %27 : vector<8x128xf32>
      %c0_20 = arith.constant 0 : index
      %c0_21 = arith.constant 0 : index
      %29 = vector.load %arg8[%c0_20, %c0_21] : memref<8x128xf32, #tpu.memory_space<vmem>>, vector<8x128xf32>
      tpu.vector_store %arg8[%c0_20, %c0_21], %28 {strides = array<i32>} : memref<8x128xf32, #tpu.memory_space<vmem>>, vector<8x128xf32>,
    } else {
    }
    return
  }
  func.func @transform_0(%arg0: i32, %arg1: i32, %arg2: i32) -> (i32, i32) {
    %c0_i32 = arith.constant 0 : i32
    %c0_i32_0 = arith.constant 0 : i32
    return %arg0, %c0_i32 : i32, i32
  }
  func.func @transform_1(%arg0: i32, %arg1: i32, %arg2: i32) -> (i32, i32) {
    %c0_i32 = arith.constant 0 : i32
    %c0_i32_0 = arith.constant 0 : i32
    return %c0_i32, %arg2 : i32, i32
  }
  func.func @transform_2(%arg0: i32, %arg1: i32, %arg2: i32) -> (i32, i32) {
    %c0_i32 = arith.constant 0 : i32
    %c0_i32_0 = arith.constant 0 : i32
    return %c0_i32, %arg2 : i32, i32
  }
  func.func @transform_3(%arg0: i32, %arg1: i32, %arg2: i32) -> (i32, i32) {
    %c0_i32 = arith.constant 0 : i32
    return %arg2, %arg1 : i32, i32
  }
  func.func @transform_4(%arg0: i32, %arg1: i32, %arg2: i32) -> (i32, i32) {
    %c0_i32 = arith.constant 0 : i32
    %c0_i32_0 = arith.constant 0 : i32
    return %c0_i32, %arg1 : i32, i32
  }
  func.func @transform_5(%arg0: i32, %arg1: i32, %arg2: i32) -> (i32, i32) {
    %c0_i32 = arith.constant 0 : i32
    return %arg0, %arg1 : i32, i32
  }
}

</mosaic_0001>

<llo_original>
// kernel: tpu_custom_call.1
$region0: #{tpu_custom_call.1}
  #allocation0 [shape = 'u32[]', space=smem, size = 0x4, offset = 0x4, fixed_abs, tag = 'smem constant byte address 0x4 - core index']
  #allocation1 [shape = 'u32[144,128]{1,0:T(1,128)}', space=vmem, size = 0x12000, scoped, tag = 'internal scratch']
  %s0 = inlined_call_operand.hbm [shape: f32[16,128], index: 0, kind: input, shape index: {}]
  %s1 = inlined_call_operand.hbm [shape: f32[128,128], index: 1, kind: input, shape index: {}]
  %s2 = inlined_call_operand.vmem [shape: f32[1,128], index: 2, kind: input, shape index: {}]
  %s3 = inlined_call_operand.hbm [shape: f32[128,128], index: 3, kind: input, shape index: {}]
  %s4 = inlined_call_operand.vmem [shape: f32[1,128], index: 4, kind: input, shape index: {}]
  %s5 = inlined_call_operand.hbm [shape: f32[16,128], index: 5, kind: output, shape index: {}]
  %s6 = sld [smem:[#allocation0]]
  $region77: #{tpu_custom_call.1} parent=0
    _
  %s8 = ssub.s32 1, %s6
  %s9 = scalar_select 0, %s8, %s6
  $region1: #{tpu_custom_call.1} parent=0
    #allocation2 [shape = 'u8[8192]{0}', space=vmem, size = 0x2000, scoped, tag = 'input window, operand 0']
    #allocation3 [shape = 's32[2]{0}', space=sflag, size = 0x8, scoped, tag = 'scoped memory for tpu_custom_call.1']
    #allocation4 [shape = 's32[2]{0}', space=sflag, size = 0x8, scoped, tag = 'scoped memory for tpu_custom_call.1']
    #allocation5 [shape = 'u8[65536]{0}', space=vmem, size = 0x10000, scoped, tag = 'input window, operand 1, single buffered']
    #allocation6 [shape = 's32[1]{0}', space=sflag, size = 0x4, scoped, tag = 'scoped memory for tpu_custom_call.1']
    #allocation7 [shape = 'u8[65536]{0}', space=vmem, size = 0x10000, scoped, tag = 'input window, operand 3, single buffered']
    #allocation8 [shape = 'u8[8192]{0}', space=vmem, size = 0x2000, scoped, tag = 'output window, operand 0']
    %10 = vsyncpa [#allocation3], 0
    %s11 = scalar_lea.sflag [#allocation3], 1
    %12 = vsyncpa %s11, 0
    %13 = vsyncpa [#allocation6], 0
    %14 = vsyncpa [#allocation4], 0
    %s15 = scalar_lea.sflag [#allocation4], 1
    %16 = vsyncpa %s15, 0
    loop: start=0, step=1, limit=4
    $region2: #{tpu_custom_call.1} parent=1 // loop_pre_header
      _
    $region3: #{tpu_custom_call.1} parent=1 // loop_header
      %s18 = sphi 0, %s22
      %p19 = scmp.ge.s32.totalorder %s18, 4
      %s25 = sphi 0, %s44
      %s26 = sphi 0, %s40
      %s27 = sphi 0, %s36
      %s28 = sphi 0, %s25
      %s29 = sphi 0, %s26
      %s30 = sphi 0, %s27
      %s31 = sphi 0, %s28
      %s32 = sphi 0, %s29
      %s33 = sphi 0, %s30
      %s47 = sphi 0, %s49
      %s50 = sphi 0, %s47
      %s51 = sphi 0, %s50
      %s67 = sphi 0, %s51
      %s73 = sphi 0, %s75
      %s76 = sphi 0, %s73
      %s77 = sphi 0, %s76
      %s93 = sphi 0, %s77
      %s99 = sphi 0, %s101
      %s102 = sphi 0, %s99
      %s103 = sphi 0, %s102
      %s119 = sphi 0, %s103
      %s127 = sphi 0, %s129
      %s130 = sphi 0, %s127
      %s131 = sphi 0, %s130
      %s147 = sphi 0, %s131
      %s153 = sphi 0, %s155
      %s156 = sphi 0, %s153
      %s157 = sphi 0, %s156
      %s173 = sphi 0, %s157
      %s181 = sphi 0, %s183
      %s184 = sphi 0, %s181
      %s185 = sphi 0, %s184
      %s201 = sphi 0, %s185
    $region4: #{tpu_custom_call.1} parent=1 // loop_header_branch
      %21 = sbr.rel (%p19) target = $region8
    $region5: #{tpu_custom_call.1} parent=1 // loop_body
      %s23 = ssub.s32 %s18, 1
      %s24 = ssub.s32 %s18, 2
      %s34 = sadd.s32 1, %s27
      %p35 = scmp.ge.s32.totalorder %s34, 1
      %s36 = scalar_select %p35, 0, %s34
      %s37 = sadd.s32 1, %s26
      %s38 = scalar_select %p35, %s37, %s26
      %p39 = scmp.ge.s32.totalorder %s38, 1
      %s40 = scalar_select %p39, 0, %s38
      %s41 = sadd.s32 1, %s25
      %s42 = scalar_select %p39, %s41, %s25
      %p43 = scmp.ge.s32.totalorder %s42, 2
      %s44 = scalar_select %p43, 0, %s42
      %s45 = ssub.s32 %s25, %s44
      %p46 = scmp.eq.s32.totalorder %s45, 0
      %s48 = sadd.s32 %s47, 1
      %s49 = scalar_select %p46, %s47, %s48
      %p52 = pneg %p46
      %p53 = scmp.eq.s32.totalorder %s18, 1
      %p54 = por %p52, %p53
      %p55 = scmp.ne.s32.totalorder %s47, %s50
      %p56 = scmp.eq.s32.totalorder %s18, 0
      %p57 = por %p55, %p56
      %p58 = scmp.ne.s32.totalorder %s47, %s50
      %p59 = scmp.eq.s32.totalorder %s23, 1
      %p60 = por %p58, %p59
      %p61 = scmp.ne.s32.totalorder %s50, %s51
      %p62 = scmp.eq.s32.totalorder %s23, 0
      %p63 = por %p61, %p62
      %p64 = scmp.ne.s32.totalorder %s50, %s51
      %p65 = scmp.eq.s32.totalorder %s24, 1
      %p66 = por %p64, %p65
      %p68 = scmp.ne.s32.totalorder %s51, %s67
      %p69 = scmp.eq.s32.totalorder %s24, 0
      %p70 = por %p68, %p69
      %s71 = ssub.s32 %s27, %s36
      %p72 = scmp.eq.s32.totalorder %s71, 0
      %s74 = sadd.s32 %s73, 1
      %s75 = scalar_select %p72, %s73, %s74
      %p78 = pneg %p72
      %p79 = scmp.eq.s32.totalorder %s18, 1
      %p80 = por %p78, %p79
      %p81 = scmp.ne.s32.totalorder %s73, %s76
      %p82 = scmp.eq.s32.totalorder %s18, 0
      %p83 = por %p81, %p82
      %p84 = scmp.ne.s32.totalorder %s73, %s76
      %p85 = scmp.eq.s32.totalorder %s23, 1
      %p86 = por %p84, %p85
      %p87 = scmp.ne.s32.totalorder %s76, %s77
      %p88 = scmp.eq.s32.totalorder %s23, 0
      %p89 = por %p87, %p88
      %p90 = scmp.ne.s32.totalorder %s76, %s77
      %p91 = scmp.eq.s32.totalorder %s24, 1
      %p92 = por %p90, %p91
      %p94 = scmp.ne.s32.totalorder %s77, %s93
      %p95 = scmp.eq.s32.totalorder %s24, 0
      %p96 = por %p94, %p95
      %s97 = ssub.s32 %s27, %s36
      %p98 = scmp.eq.s32.totalorder %s97, 0
      %s100 = sadd.s32 %s99, 1
      %s101 = scalar_select %p98, %s99, %s100
      %p104 = pneg %p98
      %p105 = scmp.eq.s32.totalorder %s18, 1
      %p106 = por %p104, %p105
      %p107 = scmp.ne.s32.totalorder %s99, %s102
      %p108 = scmp.eq.s32.totalorder %s18, 0
      %p109 = por %p107, %p108
      %p110 = scmp.ne.s32.totalorder %s99, %s102
      %p111 = scmp.eq.s32.totalorder %s23, 1
      %p112 = por %p110, %p111
      %p113 = scmp.ne.s32.totalorder %s102, %s103
      %p114 = scmp.eq.s32.totalorder %s23, 0
      %p115 = por %p113, %p114
      %p116 = scmp.ne.s32.totalorder %s102, %s103
      %p117 = scmp.eq.s32.totalorder %s24, 1
      %p118 = por %p116, %p117
      %p120 = scmp.ne.s32.totalorder %s103, %s119
      %p121 = scmp.eq.s32.totalorder %s24, 0
      %p122 = por %p120, %p121
      %s123 = ssub.s32 %s27, %s36
      %s124 = ssub.s32 %s26, %s40
      %s125 = sor.u32 %s123, %s124
      %p126 = scmp.eq.s32.totalorder %s125, 0
      %s128 = sadd.s32 %s127, 1
      %s129 = scalar_select %p126, %s127, %s128
      %p132 = pneg %p126
      %p133 = scmp.eq.s32.totalorder %s18, 1
      %p134 = por %p132, %p133
      %p135 = scmp.ne.s32.totalorder %s127, %s130
      %p136 = scmp.eq.s32.totalorder %s18, 0
      %p137 = por %p135, %p136
      %p138 = scmp.ne.s32.totalorder %s127, %s130
      %p139 = scmp.eq.s32.totalorder %s23, 1
      %p140 = por %p138, %p139
      %p141 = scmp.ne.s32.totalorder %s130, %s131
      %p142 = scmp.eq.s32.totalorder %s23, 0
      %p143 = por %p141, %p142
      %p144 = scmp.ne.s32.totalorder %s130, %s131
      %p145 = scmp.eq.s32.totalorder %s24, 1
      %p146 = por %p144, %p145
      %p148 = scmp.ne.s32.totalorder %s131, %s147
      %p149 = scmp.eq.s32.totalorder %s24, 0
      %p150 = por %p148, %p149
      %s151 = ssub.s32 %s26, %s40
      %p152 = scmp.eq.s32.totalorder %s151, 0
      %s154 = sadd.s32 %s153, 1
      %s155 = scalar_select %p152, %s153, %s154
      %p158 = pneg %p152
      %p159 = scmp.eq.s32.totalorder %s18, 1
      %p160 = por %p158, %p159
      %p161 = scmp.ne.s32.totalorder %s153, %s156
      %p162 = scmp.eq.s32.totalorder %s18, 0
      %p163 = por %p161, %p162
      %p164 = scmp.ne.s32.totalorder %s153, %s156
      %p165 = scmp.eq.s32.totalorder %s23, 1
      %p166 = por %p164, %p165
      %p167 = scmp.ne.s32.totalorder %s156, %s157
      %p168 = scmp.eq.s32.totalorder %s23, 0
      %p169 = por %p167, %p168
      %p170 = scmp.ne.s32.totalorder %s156, %s157
      %p171 = scmp.eq.s32.totalorder %s24, 1
      %p172 = por %p170, %p171
      %p174 = scmp.ne.s32.totalorder %s157, %s173
      %p175 = scmp.eq.s32.totalorder %s24, 0
      %p176 = por %p174, %p175
      %s177 = ssub.s32 %s25, %s44
      %s178 = ssub.s32 %s26, %s40
      %s179 = sor.u32 %s177, %s178
      %p180 = scmp.eq.s32.totalorder %s179, 0
      %s182 = sadd.s32 %s181, 1
      %s183 = scalar_select %p180, %s181, %s182
      %p186 = pneg %p180
      %p187 = scmp.eq.s32.totalorder %s18, 1
      %p188 = por %p186, %p187
      %p189 = scmp.ne.s32.totalorder %s181, %s184
      %p190 = scmp.eq.s32.totalorder %s18, 0
      %p191 = por %p189, %p190
      %p192 = scmp.ne.s32.totalorder %s181, %s184
      %p193 = scmp.eq.s32.totalorder %s23, 1
      %p194 = por %p192, %p193
      %p195 = scmp.ne.s32.totalorder %s184, %s185
      %p196 = scmp.eq.s32.totalorder %s23, 0
      %p197 = por %p195, %p196
      %p198 = scmp.ne.s32.totalorder %s184, %s185
      %p199 = scmp.eq.s32.totalorder %s24, 1
      %p200 = por %p198, %p199
      %p202 = scmp.ne.s32.totalorder %s185, %s201
      %p203 = scmp.eq.s32.totalorder %s24, 0
      %p204 = por %p202, %p203
      %p205 = scmp.le.s32.totalorder 1, %s18
      %p206 = scmp.lt.s32.totalorder %s18, 3
      %p207 = pnand %p205, %p206
      %p208 = pneg %p207
      // Predicated region
      $region9: #{tpu_custom_call.1} parent=5 // pred_check
        _
      $region10: #{tpu_custom_call.1} parent=5 // pred_check_branch
        %210 = sbr.rel (%p207) target = $region12
      $region11: #{tpu_custom_call.1} parent=5 // pred_region
        %s211 = ssub.s32 %s18, 1
        // Predicated region
        $region13: #{tpu_custom_call.1} parent=11 // pred_check
          %p212 = pneg %p89
        $region14: #{tpu_custom_call.1} parent=11 // pred_check_branch
          %214 = sbr.rel (%p212) target = $region16
        $region15: #{tpu_custom_call.1} parent=11 // pred_region
          %s216 = ssub.s32 2048, 2048
          %217 = vsyncadd [#allocation6], %s216
          %s218 = smul.addr %s30, 128
          %s219 = scalar_lea.hbm %s1, %s218
          %s220 = sshll.u32 [#allocation5], 4
          %s221 = int_to_ptr.vmem [resolvable:$true] %s220
          %226 = dma.hbm_to_vmem [thread:$0]  %s219, 2048, %s221, [#allocation6], 128, 128, 8
        $region16: #{tpu_custom_call.1} parent=11 // pred_fallthru
          _
        // Predicated region
        $region17: #{tpu_custom_call.1} parent=11 // pred_check
          %p227 = pneg %p115
        $region18: #{tpu_custom_call.1} parent=11 // pred_check_branch
          %229 = sbr.rel (%p227) target = $region20
        $region19: #{tpu_custom_call.1} parent=11 // pred_region
          %p230 = scmp.lt.s32.totalorder %s30, 0
          %s231 = scalar_select %p230, %s30, 0
          %s232 = scalar_lea.vmem %s2, %s231
        $region20: #{tpu_custom_call.1} parent=11 // pred_fallthru
          _
        // Predicated region
        $region21: #{tpu_custom_call.1} parent=11 // pred_check
          %p233 = pneg %p143
        $region22: #{tpu_custom_call.1} parent=11 // pred_check_branch
          %235 = sbr.rel (%p233) target = $region24
        $region23: #{tpu_custom_call.1} parent=11 // pred_region
          %s236 = smul.u32 16, %s30
          %s238 = ssub.s32 2048, 2048
          %239 = vsyncadd [#allocation6], %s238
          %s240 = sadd.s32 %s29, %s236
          %s241 = smul.addr %s240, 128
          %s242 = scalar_lea.hbm %s3, %s241
          %s243 = sshll.u32 [#allocation7], 4
          %s244 = int_to_ptr.vmem [resolvable:$true] %s243
          %249 = dma.hbm_to_vmem [thread:$0]  %s242, 2048, %s244, [#allocation6], 128, 128, 8
        $region24: #{tpu_custom_call.1} parent=11 // pred_fallthru
          _
        // Predicated region
        $region25: #{tpu_custom_call.1} parent=11 // pred_check
          %p250 = pneg %p169
        $region26: #{tpu_custom_call.1} parent=11 // pred_check_branch
          %252 = sbr.rel (%p250) target = $region28
        $region27: #{tpu_custom_call.1} parent=11 // pred_region
          %p253 = scmp.lt.s32.totalorder %s29, 0
          %s254 = scalar_select %p253, %s29, 0
          %s255 = scalar_lea.vmem %s4, %s254
        $region28: #{tpu_custom_call.1} parent=11 // pred_fallthru
          _
      $region12: #{tpu_custom_call.1} parent=5 // pred_fallthru
        _
      %p256 = scmp.lt.s32.totalorder %s18, 2
      // Predicated region
      $region29: #{tpu_custom_call.1} parent=5 // pred_check
        %p257 = pneg %p256
      $region30: #{tpu_custom_call.1} parent=5 // pred_check_branch
        %259 = sbr.rel (%p257) target = $region32
      $region31: #{tpu_custom_call.1} parent=5 // pred_region
        // Predicated region
        $region33: #{tpu_custom_call.1} parent=31 // pred_check
          %p260 = pneg %p57
        $region34: #{tpu_custom_call.1} parent=31 // pred_check_branch
          %262 = sbr.rel (%p260) target = $region36
        $region35: #{tpu_custom_call.1} parent=31 // pred_region
          %s263 = sand.u32 %s47, 1
          %s264 = scalar_lea.sflag [#allocation3], %s263
          %s265 = sand.u32 %s47, 1
          %s266 = smul.addr %s265, 8
          %s267 = scalar_lea.vmem [#allocation2], %s266
          %s269 = ssub.s32 128, 128
          %270 = vsyncadd %s264, %s269
          %s271 = smul.addr %s25, 128
          %s272 = scalar_lea.hbm %s0, %s271
          %s274 = sshll.u32 %s267, 4
          %s275 = int_to_ptr.vmem [resolvable:$true] %s274
          %277 = dma.hbm_to_vmem [thread:$0]  %s272, 128, %s275, %s264
        $region36: #{tpu_custom_call.1} parent=31 // pred_fallthru
          _
      $region32: #{tpu_custom_call.1} parent=5 // pred_fallthru
        _
      %p278 = scmp.le.s32.totalorder 1, %s18
      %p279 = scmp.lt.s32.totalorder %s18, 3
      %p280 = pnand %p278, %p279
      %p281 = pneg %p280
      // Predicated region
      $region37: #{tpu_custom_call.1} parent=5 // pred_check
        _
      $region38: #{tpu_custom_call.1} parent=5 // pred_check_branch
        %283 = sbr.rel (%p280) target = $region40
      $region39: #{tpu_custom_call.1} parent=5 // pred_region
        %s284 = ssub.s32 %s18, 1
        %s285 = sand.u32 %s50, 1
        %s286 = scalar_lea.sflag [#allocation3], %s285
        %s287 = sand.u32 %s50, 1
        %s288 = smul.addr %s287, 8
        %s289 = scalar_lea.vmem [#allocation2], %s288
        // Predicated region
        $region41: #{tpu_custom_call.1} parent=39 // pred_check
          %p290 = pneg %p63
        $region42: #{tpu_custom_call.1} parent=39 // pred_check_branch
          %292 = sbr.rel (%p290) target = $region44
        $region43: #{tpu_custom_call.1} parent=39 // pred_region
          %293 = dma.done %s286, 128
        $region44: #{tpu_custom_call.1} parent=39 // pred_fallthru
          _
        // Predicated region
        $region45: #{tpu_custom_call.1} parent=39 // pred_check
          %p294 = pneg %p89
        $region46: #{tpu_custom_call.1} parent=39 // pred_check_branch
          %296 = sbr.rel (%p294) target = $region48
        $region47: #{tpu_custom_call.1} parent=39 // pred_region
          %297 = dma.done [#allocation6], 2048
        $region48: #{tpu_custom_call.1} parent=39 // pred_fallthru
          _
        // Predicated region
        $region49: #{tpu_custom_call.1} parent=39 // pred_check
          %p298 = pneg %p143
        $region50: #{tpu_custom_call.1} parent=39 // pred_check_branch
          %300 = sbr.rel (%p298) target = $region52
        $region51: #{tpu_custom_call.1} parent=39 // pred_region
          %301 = dma.done [#allocation6], 2048
        $region52: #{tpu_custom_call.1} parent=39 // pred_fallthru
          _
        %s302 = sand.u32 %s50, 1
        %s303 = scalar_lea.sflag [#allocation3], %s302
        %s304 = sand.u32 %s50, 1
        %s305 = smul.addr %s304, 8
        %s306 = scalar_lea.vmem [#allocation2], %s305
        %p307 = pneg %p63
        %p308 = pneg %p60
        %p309 = pneg %p89
        %p310 = pneg %p86
        %p311 = scmp.lt.s32.totalorder %s30, 0
        %s312 = scalar_select %p311, %s30, 0
        %s313 = scalar_lea.vmem %s2, %s312
        %p314 = pneg %p115
        %p315 = pneg %p112
        %p316 = pneg %p143
        %p317 = pneg %p140
        %p318 = scmp.lt.s32.totalorder %s29, 0
        %s319 = scalar_select %p318, %s29, 0
        %s320 = scalar_lea.vmem %s4, %s319
        %p321 = pneg %p169
        %p322 = pneg %p166
        %p323 = pneg %p197
        %p324 = pneg %p194
        %s325 = sand.u32 %s184, 1
        %s326 = scalar_lea.sflag [#allocation4], %s325
        %s327 = sand.u32 %s184, 1
        %s328 = smul.addr %s327, 8
        %s329 = scalar_lea.vmem [#allocation8], %s328
        %p330 = scmp.lt.s32.totalorder %s30, 0
        %s331 = scalar_select %p330, %s30, 0
        %s332 = scalar_lea.vmem %s2, %s331
        %s333 = smul.u32 16, %s30
        %p334 = scmp.lt.s32.totalorder %s29, 0
        %s335 = scalar_select %p334, %s29, 0
        %s336 = scalar_lea.vmem %s4, %s335
        %v337 = vld [vmem:[%s289] sm:$0xff]
        %v338 = vld [vmem:[#allocation5] sm:$0xff]
        %v339 = vld [vmem:[#allocation5 + $0x8] sm:$0xff]
        %v340 = vld [vmem:[#allocation5 + $0x10] sm:$0xff]
        %v341 = vld [vmem:[#allocation5 + $0x18] sm:$0xff]
        %v342 = vld [vmem:[#allocation5 + $0x20] sm:$0xff]
        %v343 = vld [vmem:[#allocation5 + $0x28] sm:$0xff]
        %v344 = vld [vmem:[#allocation5 + $0x30] sm:$0xff]
        %v345 = vld [vmem:[#allocation5 + $0x38] sm:$0xff]
        %v346 = vld [vmem:[#allocation5 + $0x40] sm:$0xff]
        %v347 = vld [vmem:[#allocation5 + $0x48] sm:$0xff]
        %v348 = vld [vmem:[#allocation5 + $0x50] sm:$0xff]
        %v349 = vld [vmem:[#allocation5 + $0x58] sm:$0xff]
        %v350 = vld [vmem:[#allocation5 + $0x60] sm:$0xff]
        %v351 = vld [vmem:[#allocation5 + $0x68] sm:$0xff]
        %v352 = vld [vmem:[#allocation5 + $0x70] sm:$0xff]
        %v353 = vld [vmem:[#allocation5 + $0x78] sm:$0xff]
        %v354 = vld [vmem:[%s332] sm:$0x1]
        %v356 = vlaneseq
        %v357 = vshrl.u32 %v356, 7
        %v358 = vsub.s32 0, %v357
        %v359 = vrot.slane %v354, %v358
        %361 = vmatprep.subr.mxu0 0.0
        %362 = vmatpush1.msra.mxu0 %v338
        %363 = vmatprep.subr.mxu0 0.0
        %364 = vmatpush1.msra.mxu0 %v339
        %365 = vmatprep.subr.mxu0 0.0
        %366 = vmatpush1.msra.mxu0 %v340
        %367 = vmatprep.subr.mxu0 0.0
        %368 = vmatpush1.msra.mxu0 %v341
        %369 = vmatprep.subr.mxu0 0.0
        %370 = vmatpush1.msra.mxu0 %v342
        %371 = vmatprep.subr.mxu0 0.0
        %372 = vmatpush1.msra.mxu0 %v343
        %373 = vmatprep.subr.mxu0 0.0
        %374 = vmatpush1.msra.mxu0 %v344
        %375 = vmatprep.subr.mxu0 0.0
        %376 = vmatpush1.msra.mxu0 %v345
        %377 = vmatprep.subr.mxu0 0.0
        %378 = vmatpush1.msra.mxu0 %v346
        %379 = vmatprep.subr.mxu0 0.0
        %380 = vmatpush1.msra.mxu0 %v347
        %381 = vmatprep.subr.mxu0 0.0
        %382 = vmatpush1.msra.mxu0 %v348
        %383 = vmatprep.subr.mxu0 0.0
        %384 = vmatpush1.msra.mxu0 %v349
        %385 = vmatprep.subr.mxu0 0.0
        %386 = vmatpush1.msra.mxu0 %v350
        %387 = vmatprep.subr.mxu0 0.0
        %388 = vmatpush1.msra.mxu0 %v351
        %389 = vmatprep.subr.mxu0 0.0
        %390 = vmatpush1.msra.mxu0 %v352
        %391 = vmatprep.subr.mxu0 0.0
        %392 = vmatpush1.msra.mxu0 %v353
        %393 = vmatprep.subr.mxu0 0.0
        %394 = vmatpush1.msra.mxu0 0.0
        %395 = vmatprep.subr.mxu0 0.0
        %396 = vmatpush1.msra.mxu0 0.0
        %397 = vmatprep.subr.mxu0 0.0
        %398 = vmatpush1.msra.mxu0 0.0
        %399 = vmatprep.subr.mxu0 0.0
        %400 = vmatpush1.msra.mxu0 0.0
        %401 = vmatprep.subr.mxu0 0.0
        %402 = vmatpush1.msra.mxu0 0.0
        %403 = vmatprep.subr.mxu0 0.0
        %404 = vmatpush1.msra.mxu0 0.0
        %405 = vmatprep.subr.mxu0 0.0
        %406 = vmatpush1.msra.mxu0 0.0
        %407 = vmatprep.subr.mxu0 0.0
        %408 = vmatpush1.msra.mxu0 0.0
        %409 = vmatprep.subr.mxu0 0.0
        %410 = vmatpush1.msra.mxu0 0.0
        %411 = vmatprep.subr.mxu0 0.0
        %412 = vmatpush1.msra.mxu0 0.0
        %413 = vmatprep.subr.mxu0 0.0
        %414 = vmatpush1.msra.mxu0 0.0
        %415 = vmatprep.subr.mxu0 0.0
        %416 = vmatpush1.msra.mxu0 0.0
        %417 = vmatprep.subr.mxu0 0.0
        %418 = vmatpush1.msra.mxu0 0.0
        %419 = vmatprep.subr.mxu0 0.0
        %420 = vmatpush1.msra.mxu0 0.0
        %421 = vmatprep.subr.mxu0 0.0
        %422 = vmatpush1.msra.mxu0 0.0
        %423 = vmatprep.subr.mxu0 0.0
        %424 = vmatpush1.msra.mxu0 0.0
        %425 = vmatprep.mubr.f32.mxu0 0.0
        %426 = vmatmul.mubr.f32.gmra.mrb[0].mxu0 %v337
        %v427 = vpop.f32.mrb[0].mxu0
        %v428 = vadd.f32 %v359, %v427
        %v429 = vpop.f32.mrb[0].mxu0
        %430 = vdwg.mxu0
        %v431 = vmul.f32 %v428, 0.5
        %v432 = vmul.f32 %v428, 0.70710677
        %v433 = verf.f32.pop %v432
        %v434 = vadd.f32 %v433, 1.0
        %v435 = vmul.f32 %v431, %v434
        %v436 = vld [vmem:[#allocation7] sm:$0xff]
        %v437 = vld [vmem:[#allocation7 + $0x8] sm:$0xff]
        %v438 = vld [vmem:[#allocation7 + $0x10] sm:$0xff]
        %v439 = vld [vmem:[#allocation7 + $0x18] sm:$0xff]
        %v440 = vld [vmem:[#allocation7 + $0x20] sm:$0xff]
        %v441 = vld [vmem:[#allocation7 + $0x28] sm:$0xff]
        %v442 = vld [vmem:[#allocation7 + $0x30] sm:$0xff]
        %v443 = vld [vmem:[#allocation7 + $0x38] sm:$0xff]
        %v444 = vld [vmem:[#allocation7 + $0x40] sm:$0xff]
        %v445 = vld [vmem:[#allocation7 + $0x48] sm:$0xff]
        %v446 = vld [vmem:[#allocation7 + $0x50] sm:$0xff]
        %v447 = vld [vmem:[#allocation7 + $0x58] sm:$0xff]
        %v448 = vld [vmem:[#allocation7 + $0x60] sm:$0xff]
        %v449 = vld [vmem:[#allocation7 + $0x68] sm:$0xff]
        %v450 = vld [vmem:[#allocation7 + $0x70] sm:$0xff]
        %v451 = vld [vmem:[#allocation7 + $0x78] sm:$0xff]
        %452 = vmatprep.subr.mxu0 0.0
        %453 = vmatpush1.msra.mxu0 %v436
        %454 = vmatprep.subr.mxu0 0.0
        %455 = vmatpush1.msra.mxu0 %v437
        %456 = vmatprep.subr.mxu0 0.0
        %457 = vmatpush1.msra.mxu0 %v438
        %458 = vmatprep.subr.mxu0 0.0
        %459 = vmatpush1.msra.mxu0 %v439
        %460 = vmatprep.subr.mxu0 0.0
        %461 = vmatpush1.msra.mxu0 %v440
        %462 = vmatprep.subr.mxu0 0.0
        %463 = vmatpush1.msra.mxu0 %v441
        %464 = vmatprep.subr.mxu0 0.0
        %465 = vmatpush1.msra.mxu0 %v442
        %466 = vmatprep.subr.mxu0 0.0
        %467 = vmatpush1.msra.mxu0 %v443
        %468 = vmatprep.subr.mxu0 0.0
        %469 = vmatpush1.msra.mxu0 %v444
        %470 = vmatprep.subr.mxu0 0.0
        %471 = vmatpush1.msra.mxu0 %v445
        %472 = vmatprep.subr.mxu0 0.0
        %473 = vmatpush1.msra.mxu0 %v446
        %474 = vmatprep.subr.mxu0 0.0
        %475 = vmatpush1.msra.mxu0 %v447
        %476 = vmatprep.subr.mxu0 0.0
        %477 = vmatpush1.msra.mxu0 %v448
        %478 = vmatprep.subr.mxu0 0.0
        %479 = vmatpush1.msra.mxu0 %v449
        %480 = vmatprep.subr.mxu0 0.0
        %481 = vmatpush1.msra.mxu0 %v450
        %482 = vmatprep.subr.mxu0 0.0
        %483 = vmatpush1.msra.mxu0 %v451
        %484 = vmatprep.subr.mxu0 0.0
        %485 = vmatpush1.msra.mxu0 0.0
        %486 = vmatprep.subr.mxu0 0.0
        %487 = vmatpush1.msra.mxu0 0.0
        %488 = vmatprep.subr.mxu0 0.0
        %489 = vmatpush1.msra.mxu0 0.0
        %490 = vmatprep.subr.mxu0 0.0
        %491 = vmatpush1.msra.mxu0 0.0
        %492 = vmatprep.subr.mxu0 0.0
        %493 = vmatpush1.msra.mxu0 0.0
        %494 = vmatprep.subr.mxu0 0.0
        %495 = vmatpush1.msra.mxu0 0.0
        %496 = vmatprep.subr.mxu0 0.0
        %497 = vmatpush1.msra.mxu0 0.0
        %498 = vmatprep.subr.mxu0 0.0
        %499 = vmatpush1.msra.mxu0 0.0
        %500 = vmatprep.subr.mxu0 0.0
        %501 = vmatpush1.msra.mxu0 0.0
        %502 = vmatprep.subr.mxu0 0.0
        %503 = vmatpush1.msra.mxu0 0.0
        %504 = vmatprep.subr.mxu0 0.0
        %505 = vmatpush1.msra.mxu0 0.0
        %506 = vmatprep.subr.mxu0 0.0
        %507 = vmatpush1.msra.mxu0 0.0
        %508 = vmatprep.subr.mxu0 0.0
        %509 = vmatpush1.msra.mxu0 0.0
        %510 = vmatprep.subr.mxu0 0.0
        %511 = vmatpush1.msra.mxu0 0.0
        %512 = vmatprep.subr.mxu0 0.0
        %513 = vmatpush1.msra.mxu0 0.0
        %514 = vmatprep.subr.mxu0 0.0
        %515 = vmatpush1.msra.mxu0 0.0
        %516 = vmatprep.mubr.f32.mxu0 0.0
        %517 = vmatmul.mubr.f32.gmra.mrb[0].mxu0 %v435
        %v518 = vpop.f32.mrb[0].mxu0
        %v519 = vadd.f32 0.0, %v518
        %v520 = vpop.f32.mrb[0].mxu0
        %521 = vdwg.mxu0
        %p522 = scmp.eq.s32.totalorder %s30, 0
        // Predicated region
        $region53: #{tpu_custom_call.1} parent=39 // pred_check
          %p523 = pneg %p522
        $region54: #{tpu_custom_call.1} parent=39 // pred_check_branch
          %525 = sbr.rel (%p523) target = $region56
        $region55: #{tpu_custom_call.1} parent=39 // pred_region
          %526 = vst [vmem:[%s329] sm:$0xff] %v519
        $region56: #{tpu_custom_call.1} parent=39 // pred_fallthru
          _
        %p527 = scmp.ne.s32.totalorder %s30, 0
        // Predicated region
        $region57: #{tpu_custom_call.1} parent=39 // pred_check
          %p528 = pneg %p527
        $region58: #{tpu_custom_call.1} parent=39 // pred_check_branch
          %530 = sbr.rel (%p528) target = $region60
        $region59: #{tpu_custom_call.1} parent=39 // pred_region
          %v531 = vld [vmem:[%s329] sm:$0xff]
          %v532 = vadd.f32 %v531, %v519
          %533 = vst [vmem:[%s329] sm:$0xff] %v532
        $region60: #{tpu_custom_call.1} parent=39 // pred_fallthru
          _
        // Predicated region
        $region61: #{tpu_custom_call.1} parent=39 // pred_check
          %p534 = pneg %p522
        $region62: #{tpu_custom_call.1} parent=39 // pred_check_branch
          %536 = sbr.rel (%p534) target = $region64
        $region63: #{tpu_custom_call.1} parent=39 // pred_region
          %v537 = vld [vmem:[%s329] sm:$0xff]
          %v538 = vld [vmem:[%s336] sm:$0x1]
          %v540 = vlaneseq
          %v541 = vshrl.u32 %v540, 7
          %v542 = vsub.s32 0, %v541
          %v543 = vrot.slane %v538, %v542
          %v545 = vadd.f32 %v537, %v543
          %546 = vst [vmem:[%s329] sm:$0xff] %v545
        $region64: #{tpu_custom_call.1} parent=39 // pred_fallthru
          _
        %s547 = sand.u32 %s184, 1
        %s548 = scalar_lea.sflag [#allocation4], %s547
        %s549 = sand.u32 %s184, 1
        %s550 = smul.addr %s549, 8
        %s551 = scalar_lea.vmem [#allocation8], %s550
        // Predicated region
        $region65: #{tpu_custom_call.1} parent=39 // pred_check
          %p552 = pneg %p194
        $region66: #{tpu_custom_call.1} parent=39 // pred_check_branch
          %554 = sbr.rel (%p552) target = $region68
        $region67: #{tpu_custom_call.1} parent=39 // pred_region
          %s556 = ssub.s32 128, 128
          %557 = vsyncadd %s548, %s556
          %s558 = sadd.s32 %s29, %s28
          %s559 = smul.addr %s558, 128
          %s560 = scalar_lea.hbm %s5, %s559
          %s562 = sshll.u32 %s551, 4
          %s563 = int_to_ptr.vmem [resolvable:$true] %s562
          %565 = dma.vmem_to_hbm [thread:$0]  %s563, 128, %s560, %s548
        $region68: #{tpu_custom_call.1} parent=39 // pred_fallthru
          _
      $region40: #{tpu_custom_call.1} parent=5 // pred_fallthru
        _
      %p566 = scmp.le.s32.totalorder 2, %s18
      // Predicated region
      $region69: #{tpu_custom_call.1} parent=5 // pred_check
        %p567 = pneg %p566
      $region70: #{tpu_custom_call.1} parent=5 // pred_check_branch
        %569 = sbr.rel (%p567) target = $region72
      $region71: #{tpu_custom_call.1} parent=5 // pred_region
        %s570 = ssub.s32 %s18, 2
        // Predicated region
        $region73: #{tpu_custom_call.1} parent=71 // pred_check
          %p571 = pneg %p200
        $region74: #{tpu_custom_call.1} parent=71 // pred_check_branch
          %573 = sbr.rel (%p571) target = $region76
        $region75: #{tpu_custom_call.1} parent=71 // pred_region
          %s574 = sand.u32 %s185, 1
          %s575 = scalar_lea.sflag [#allocation4], %s574
          %s576 = sand.u32 %s185, 1
          %s577 = smul.addr %s576, 8
          %s578 = scalar_lea.vmem [#allocation8], %s577
          %579 = dma.done %s575, 128
        $region76: #{tpu_custom_call.1} parent=71 // pred_fallthru
          _
      $region72: #{tpu_custom_call.1} parent=5 // pred_fallthru
        _
    $region6: #{tpu_custom_call.1} parent=1 // loop_footer
      %s22 = sadd.s32 1, %s18
    $region7: #{tpu_custom_call.1} parent=1 // loop_footer_branch
      %17 = sbr.rel target = $region3
    $region8: #{tpu_custom_call.1} parent=1 // loop_exit
      _
    %580 = vsyncpa [#allocation3], 1
    %s581 = scalar_lea.sflag [#allocation3], 1
    %582 = vsyncpa %s581, 1
    %583 = vsyncpa [#allocation6], 1
    %584 = vsyncpa [#allocation4], 1
    %s585 = scalar_lea.sflag [#allocation4], 1
    %586 = vsyncpa %s585, 1

</llo_original>
